<compile_context>
chip_gen: v7x
topology: tpu7x:2x2x1
jax: 0.10.0
libtpu: 0.0.40
codegen_flags: <defaults>
</compile_context>

<pallas_src>
import functools

import jax
import jax.numpy as jnp
from jax.experimental import pallas as pl
from jax.experimental.pallas import tpu as pltpu


def _round_up(x: int, m: int) -> int:
    return (x + m - 1) // m * m


def recsys_kernel(B,                      # static python int (bound via partial)
                  uid_ref, mid_ref,       # (B_pad,) int32, SMEM (scalar prefetch)
                  u_hbm, m_hbm,           # (n_users, F) / (n_movies, F) f32, HBM (pl.ANY)
                  w_ref,                  # (2, F) f32, VMEM (row 0 = user half, row 1 = movie half)
                  b_ref,                  # (1, 1) f32, SMEM
                  o_ref,                  # (1, 1, TB) f32, VMEM output block (lane-dense)
                  u_buf, m_buf,           # (TB, F) f32 VMEM gather slabs
                  sem):                   # DMA semaphores, shape (2,)
    TB, F = u_buf.shape
    t = pl.program_id(0)
    base = t * TB
    valid = jnp.minimum(TB, B - base)     # real batch rows in this tile

    # ---- gather: issue all row DMAs for this tile (many in flight), then drain ----
    @pl.loop(0, valid)
    def _(j):
        u_row = uid_ref[base + j]
        m_row = mid_ref[base + j]
        pltpu.make_async_copy(u_hbm.at[u_row], u_buf.at[j], sem.at[0]).start()
        pltpu.make_async_copy(m_hbm.at[m_row], m_buf.at[j], sem.at[1]).start()

    @pl.loop(0, valid)
    def _(j):
        # Wait descriptors only need the semaphore + transfer size; all row DMAs are
        # identical (1 row of F f32), so a fixed-index descriptor drains one each.
        pltpu.make_async_copy(u_hbm.at[0], u_buf.at[0], sem.at[0]).wait()
        pltpu.make_async_copy(m_hbm.at[0], m_buf.at[0], sem.at[1]).wait()

    # Rows >= valid are uninitialized scratch; they produce garbage outputs that the
    # wrapper slices off, so no masking/zeroing work is spent on padding.

    # ---- Linear(2F -> 1) on VPU + XLU: sum(u*w_u + m*w_m, axis=-1) + b ----
    w = w_ref[...]                                                # (2, F)
    contrib = u_buf[...] * w[0:1, :] + m_buf[...] * w[1:2, :]     # (TB, F), VPU
    scores = jnp.sum(contrib, axis=1) + b_ref[0, 0]               # (TB,), XLU reduce
    o_ref[...] = scores[None, None, :].astype(o_ref.dtype)        # lane-dense (1,1,TB) store


def recsys_forward(user_id, movie_id, user_table, movie_table, w, b):
    """user_id/movie_id: (B,) int ids.  Returns (B, 1) float32 (same as the torch forward)."""
    B = user_id.shape[0]
    n_users, F = user_table.shape
    n_movies = movie_table.shape[0]

    # Batch tile: multiple of 128 (lane-dense output), large to amortize per-tile cost.
    # For very large B on v7x, TB=512 yields num_tiles >= 2 so both TensorCores get work.
    TB = min(512, _round_up(B, 128))
    B_pad = _round_up(B, TB)
    num_tiles = B_pad // TB

    def _prep_ids(ids, n_rows):
        ids = jnp.clip(ids.astype(jnp.int32), 0, n_rows - 1)  # guard against OOB row DMA
        return jnp.pad(ids, (0, B_pad - B))                   # padded rows never DMA'd

    uid = _prep_ids(user_id, n_users)
    mid = _prep_ids(movie_id, n_movies)

    # Tables stay in HBM (pl.ANY); the kernel gathers only the addressed rows.
    # (Optionally store tables as bf16 to halve gather bytes; kept f32 to match module.)
    ut = user_table.astype(jnp.float32)
    mt = movie_table.astype(jnp.float32)

    # torch Linear weight is (1, 2F); split into user / movie halves as a (2, F) block.
    w2 = w.astype(jnp.float32).reshape(2, F)
    b2 = b.astype(jnp.float32).reshape(1, 1)

    grid_spec = pltpu.PrefetchScalarGridSpec(
        num_scalar_prefetch=2,
        grid=(num_tiles,),
        in_specs=[
            pl.BlockSpec(memory_space=pl.ANY),                        # user table (HBM)
            pl.BlockSpec(memory_space=pl.ANY),                        # movie table (HBM)
            pl.BlockSpec((2, F), lambda t, u_ids, m_ids: (0, 0)),     # resident weight block
            pl.BlockSpec(memory_space=pltpu.MemorySpace.SMEM),        # bias scalar
        ],
        out_specs=pl.BlockSpec((1, 1, TB), lambda t, u_ids, m_ids: (t, 0, 0)),
        scratch_shapes=[
            pltpu.VMEM((TB, F), jnp.float32),
            pltpu.VMEM((TB, F), jnp.float32),
            pltpu.SemaphoreType.DMA((2,)),
        ],
    )

    out = pl.pallas_call(
        functools.partial(recsys_kernel, B),
        out_shape=jax.ShapeDtypeStruct((num_tiles, 1, TB), jnp.float32),
        grid_spec=grid_spec,
        compiler_params=pltpu.CompilerParams(
            dimension_semantics=("parallel",)),
    )(uid, mid, ut, mt, w2, b2)

    # (num_tiles, 1, TB) -> (B_pad,) -> (B, 1); padded entries are dropped here.
    return out.reshape(-1)[:B][:, None]


if __name__ == "__main__":
    # Small, deterministic synthetic setup consistent with the module's __init__.
    n_users, n_movies, n_factors = 64, 128, 32
    batch = 8

    key = jax.random.PRNGKey(0)
    k_ut, k_mt, k_w, k_b, k_uid, k_mid = jax.random.split(key, 6)

    # Deterministic parameter init (nn.Embedding ~ N(0,1); nn.Linear ~ U(-1/sqrt(fan_in), ...)).
    user_table = jax.random.normal(k_ut, (n_users, n_factors), dtype=jnp.float32)
    movie_table = jax.random.normal(k_mt, (n_movies, n_factors), dtype=jnp.float32)
    bound = 1.0 / jnp.sqrt(2.0 * n_factors)
    w = jax.random.uniform(k_w, (1, 2 * n_factors), minval=-bound, maxval=bound,
                           dtype=jnp.float32)
    b = jax.random.uniform(k_b, (1,), minval=-bound, maxval=bound, dtype=jnp.float32)

    user_id = jax.random.randint(k_uid, (batch,), 0, n_users, dtype=jnp.int32)
    movie_id = jax.random.randint(k_mid, (batch,), 0, n_movies, dtype=jnp.int32)

    out = recsys_forward(user_id, movie_id, user_table, movie_table, w, b)
    out = jax.block_until_ready(out)

    # Pure-JAX reference check (same semantics as the torch forward).
    u_ref = user_table[user_id]
    m_ref = movie_table[movie_id]
    ref = jnp.concatenate([u_ref, m_ref], axis=1) @ w.T + b
    assert out.shape == (batch, 1)
    assert jnp.allclose(out, ref, atol=1e-5, rtol=1e-5), (out, ref)

    print("KERNEL_OK")
</pallas_src>

<mosaic_0001>
module attributes {stable_mosaic.version = 11 : i64} {
  func.func @recsys_kernel(%arg0: i32, %arg1: memref<128xi32, #tpu.memory_space<smem>>, %arg2: memref<128xi32, #tpu.memory_space<smem>>, %arg3: memref<64x32xf32, #tpu.memory_space<any>>, %arg4: memref<128x32xf32, #tpu.memory_space<any>>, %arg5: memref<2x32xf32, #tpu.memory_space<vmem>>, %arg6: memref<1x1xf32, #tpu.memory_space<smem>>, %arg7: memref<1x1x128xf32, #tpu.memory_space<vmem>>, %arg8: memref<128x32xf32, #tpu.memory_space<vmem>>, %arg9: memref<128x32xf32, #tpu.memory_space<vmem>>, %arg10: memref<2x!tpu.dma_semaphore, #tpu.memory_space<semaphore_mem>>) attributes {dimension_semantics = [#tpu.dimension_semantics<parallel>], iteration_bounds = array<i64: 1>, scalar_prefetch = 2 : i64, scratch_operands = 3 : i64, tpu.core_type = #tpu.core_type<tc>, window_params = [{}, {}, {pipeline_mode = #tpu.pipeline_mode<synchronous>, transform_indices = @transform_2, window_bounds = array<i64: 2, 32>}, {transform_indices = @transform_3, window_bounds = array<i64: 1, 1>}, {transform_indices = @transform_4, window_bounds = array<i64: 1, 1, 128>}]} {
    %c128_i32 = arith.constant 128 : i32
    %0 = arith.muli %arg0, %c128_i32 : i32
    %c8_i32 = arith.constant 8 : i32
    %1 = arith.subi %c8_i32, %0 : i32
    %c128_i32_0 = arith.constant 128 : i32
    %2 = arith.minsi %c128_i32_0, %1 : i32
    %c0_i32 = arith.constant 0 : i32
    %3 = arith.subi %2, %c0_i32 : i32
    %c1_i32 = arith.constant 1 : i32
    %c1_i32_1 = arith.constant 1 : i32
    %4 = arith.subi %c1_i32, %c1_i32_1 : i32
    %5 = arith.addi %3, %4 : i32
    %c1_i32_2 = arith.constant 1 : i32
    %6 = arith.divsi %5, %c1_i32_2 : i32
    %c1_i32_3 = arith.constant 1 : i32
    %c0_i32_4 = arith.constant 0 : i32
    %c0_i32_5 = arith.constant 0 : i32
    %7 = arith.subi %6, %c0_i32_5 : i32
    %8 = arith.addi %c0_i32_5, %7 : i32
    %c1_i32_6 = arith.constant 1 : i32
    scf.for %arg11 = %c0_i32_5 to %8 step %c1_i32_6  : i32 {
      %31 = arith.muli %arg11, %c1_i32_3 : i32
      %32 = arith.addi %c0_i32_4, %31 : i32
      %33 = arith.addi %0, %32 : i32
      %34 = arith.index_cast %33 : i32 to index
      %35 = memref.load %arg1[%34] : memref<128xi32, #tpu.memory_space<smem>>
      %36 = arith.addi %0, %32 : i32
      %37 = arith.index_cast %36 : i32 to index
      %38 = memref.load %arg2[%37] : memref<128xi32, #tpu.memory_space<smem>>
      %c0_i32_25 = arith.constant 0 : i32
      %c0_i32_26 = arith.constant 0 : i32
      %39 = tpu.memref_slice %arg3[%35, %c0_i32_26] : memref<64x32xf32, #tpu.memory_space<any>> -> memref<1x32xf32, #tpu.memory_space<any>>
      %40 = tpu.memref_squeeze %39 : memref<1x32xf32, #tpu.memory_space<any>> -> memref<32xf32, #tpu.memory_space<any>>
      %c0_i32_27 = arith.constant 0 : i32
      %41 = tpu.memref_slice %arg8[%32, %c0_i32_27] : memref<128x32xf32, #tpu.memory_space<vmem>> -> memref<1x32xf32, #tpu.memory_space<vmem>>
      %42 = tpu.memref_squeeze %41 : memref<1x32xf32, #tpu.memory_space<vmem>> -> memref<32xf32, #tpu.memory_space<vmem>>
      %43 = tpu.memref_slice %arg10[%c0_i32_25] : memref<2x!tpu.dma_semaphore, #tpu.memory_space<semaphore_mem>> -> memref<1x!tpu.dma_semaphore, #tpu.memory_space<semaphore_mem>>
      %44 = tpu.memref_squeeze %43 : memref<1x!tpu.dma_semaphore, #tpu.memory_space<semaphore_mem>> -> memref<!tpu.dma_semaphore, #tpu.memory_space<semaphore_mem>>
      tpu.enqueue_dma source(%40 : memref<32xf32, #tpu.memory_space<any>>) target(%42 : memref<32xf32, #tpu.memory_space<vmem>>) target_semaphore(%44 : memref<!tpu.dma_semaphore, #tpu.memory_space<semaphore_mem>>)
      %c1_i32_28 = arith.constant 1 : i32
      %c0_i32_29 = arith.constant 0 : i32
      %45 = tpu.memref_slice %arg4[%38, %c0_i32_29] : memref<128x32xf32, #tpu.memory_space<any>> -> memref<1x32xf32, #tpu.memory_space<any>>
      %46 = tpu.memref_squeeze %45 : memref<1x32xf32, #tpu.memory_space<any>> -> memref<32xf32, #tpu.memory_space<any>>
      %c0_i32_30 = arith.constant 0 : i32
      %47 = tpu.memref_slice %arg9[%32, %c0_i32_30] : memref<128x32xf32, #tpu.memory_space<vmem>> -> memref<1x32xf32, #tpu.memory_space<vmem>>
      %48 = tpu.memref_squeeze %47 : memref<1x32xf32, #tpu.memory_space<vmem>> -> memref<32xf32, #tpu.memory_space<vmem>>
      %49 = tpu.memref_slice %arg10[%c1_i32_28] : memref<2x!tpu.dma_semaphore, #tpu.memory_space<semaphore_mem>> -> memref<1x!tpu.dma_semaphore, #tpu.memory_space<semaphore_mem>>
      %50 = tpu.memref_squeeze %49 : memref<1x!tpu.dma_semaphore, #tpu.memory_space<semaphore_mem>> -> memref<!tpu.dma_semaphore, #tpu.memory_space<semaphore_mem>>
      tpu.enqueue_dma source(%46 : memref<32xf32, #tpu.memory_space<any>>) target(%48 : memref<32xf32, #tpu.memory_space<vmem>>) target_semaphore(%50 : memref<!tpu.dma_semaphore, #tpu.memory_space<semaphore_mem>>)
    }
    %c0_i32_7 = arith.constant 0 : i32
    %9 = arith.subi %2, %c0_i32_7 : i32
    %c1_i32_8 = arith.constant 1 : i32
    %c1_i32_9 = arith.constant 1 : i32
    %10 = arith.subi %c1_i32_8, %c1_i32_9 : i32
    %11 = arith.addi %9, %10 : i32
    %c1_i32_10 = arith.constant 1 : i32
    %12 = arith.divsi %11, %c1_i32_10 : i32
    %c1_i32_11 = arith.constant 1 : i32
    %c0_i32_12 = arith.constant 0 : i32
    %c0_i32_13 = arith.constant 0 : i32
    %13 = arith.subi %12, %c0_i32_13 : i32
    %14 = arith.addi %c0_i32_13, %13 : i32
    %c1_i32_14 = arith.constant 1 : i32
    scf.for %arg11 = %c0_i32_13 to %14 step %c1_i32_14  : i32 {
      %31 = arith.muli %arg11, %c1_i32_11 : i32
      %32 = arith.addi %c0_i32_12, %31 : i32
      %c0_i32_25 = arith.constant 0 : i32
      %c0_i32_26 = arith.constant 0 : i32
      %c0_i32_27 = arith.constant 0 : i32
      %c0_i32_28 = arith.constant 0 : i32
      %33 = tpu.memref_slice %arg3[%c0_i32_25, %c0_i32_28] : memref<64x32xf32, #tpu.memory_space<any>> -> memref<1x32xf32, #tpu.memory_space<any>>
      %34 = tpu.memref_squeeze %33 : memref<1x32xf32, #tpu.memory_space<any>> -> memref<32xf32, #tpu.memory_space<any>>
      %c0_i32_29 = arith.constant 0 : i32
      %35 = tpu.memref_slice %arg8[%c0_i32_26, %c0_i32_29] : memref<128x32xf32, #tpu.memory_space<vmem>> -> memref<1x32xf32, #tpu.memory_space<vmem>>
      %36 = tpu.memref_squeeze %35 : memref<1x32xf32, #tpu.memory_space<vmem>> -> memref<32xf32, #tpu.memory_space<vmem>>
      %37 = tpu.memref_slice %arg10[%c0_i32_27] : memref<2x!tpu.dma_semaphore, #tpu.memory_space<semaphore_mem>> -> memref<1x!tpu.dma_semaphore, #tpu.memory_space<semaphore_mem>>
      %38 = tpu.memref_squeeze %37 : memref<1x!tpu.dma_semaphore, #tpu.memory_space<semaphore_mem>> -> memref<!tpu.dma_semaphore, #tpu.memory_space<semaphore_mem>>
      tpu.wait_dma2 semaphore(%38 : memref<!tpu.dma_semaphore, #tpu.memory_space<semaphore_mem>>) src(%34 : memref<32xf32, #tpu.memory_space<any>>) dst(%36 : memref<32xf32, #tpu.memory_space<vmem>>)
      %c0_i32_30 = arith.constant 0 : i32
      %c0_i32_31 = arith.constant 0 : i32
      %c1_i32_32 = arith.constant 1 : i32
      %c0_i32_33 = arith.constant 0 : i32
      %39 = tpu.memref_slice %arg4[%c0_i32_30, %c0_i32_33] : memref<128x32xf32, #tpu.memory_space<any>> -> memref<1x32xf32, #tpu.memory_space<any>>
      %40 = tpu.memref_squeeze %39 : memref<1x32xf32, #tpu.memory_space<any>> -> memref<32xf32, #tpu.memory_space<any>>
      %c0_i32_34 = arith.constant 0 : i32
      %41 = tpu.memref_slice %arg9[%c0_i32_31, %c0_i32_34] : memref<128x32xf32, #tpu.memory_space<vmem>> -> memref<1x32xf32, #tpu.memory_space<vmem>>
      %42 = tpu.memref_squeeze %41 : memref<1x32xf32, #tpu.memory_space<vmem>> -> memref<32xf32, #tpu.memory_space<vmem>>
      %43 = tpu.memref_slice %arg10[%c1_i32_32] : memref<2x!tpu.dma_semaphore, #tpu.memory_space<semaphore_mem>> -> memref<1x!tpu.dma_semaphore, #tpu.memory_space<semaphore_mem>>
      %44 = tpu.memref_squeeze %43 : memref<1x!tpu.dma_semaphore, #tpu.memory_space<semaphore_mem>> -> memref<!tpu.dma_semaphore, #tpu.memory_space<semaphore_mem>>
      tpu.wait_dma2 semaphore(%44 : memref<!tpu.dma_semaphore, #tpu.memory_space<semaphore_mem>>) src(%40 : memref<32xf32, #tpu.memory_space<any>>) dst(%42 : memref<32xf32, #tpu.memory_space<vmem>>)
    }
    %c0 = arith.constant 0 : index
    %c0_15 = arith.constant 0 : index
    %15 = vector.load %arg5[%c0, %c0_15] : memref<2x32xf32, #tpu.memory_space<vmem>>, vector<2x32xf32>
    %c0_16 = arith.constant 0 : index
    %c0_17 = arith.constant 0 : index
    %16 = vector.load %arg8[%c0_16, %c0_17] : memref<128x32xf32, #tpu.memory_space<vmem>>, vector<128x32xf32>
    %17 = vector.extract_strided_slice %15 {offsets = [0, 0], sizes = [1, 32], strides = [1, 1]} : vector<2x32xf32> to vector<1x32xf32>
    %18 = vector.broadcast %17 : vector<1x32xf32> to vector<128x32xf32>
    %19 = arith.mulf %16, %18 : vector<128x32xf32>
    %c0_18 = arith.constant 0 : index
    %c0_19 = arith.constant 0 : index
    %20 = vector.load %arg9[%c0_18, %c0_19] : memref<128x32xf32, #tpu.memory_space<vmem>>, vector<128x32xf32>
    %21 = vector.extract_strided_slice %15 {offsets = [1, 0], sizes = [1, 32], strides = [1, 1]} : vector<2x32xf32> to vector<1x32xf32>
    %22 = vector.broadcast %21 : vector<1x32xf32> to vector<128x32xf32>
    %23 = arith.mulf %20, %22 : vector<128x32xf32>
    %24 = arith.addf %19, %23 : vector<128x32xf32>
    %cst = arith.constant dense<0.000000e+00> : vector<128xf32>
    %25 = vector.multi_reduction <add>, %24, %cst [1] : vector<128x32xf32> to vector<128xf32>
    %c0_20 = arith.constant 0 : index
    %c0_21 = arith.constant 0 : index
    %26 = memref.load %arg6[%c0_20, %c0_21] : memref<1x1xf32, #tpu.memory_space<smem>>
    %27 = vector.broadcast %26 : f32 to vector<128xf32>
    %28 = arith.addf %25, %27 : vector<128xf32>
    %29 = vector.shape_cast %28 : vector<128xf32> to vector<1x1x128xf32>
    %c0_22 = arith.constant 0 : index
    %c0_23 = arith.constant 0 : index
    %c0_24 = arith.constant 0 : index
    %30 = vector.load %arg7[%c0_22, %c0_23, %c0_24] : memref<1x1x128xf32, #tpu.memory_space<vmem>>, vector<1x1x128xf32>
    tpu.vector_store %arg7[%c0_22, %c0_23, %c0_24], %29 {strides = array<i32>} : memref<1x1x128xf32, #tpu.memory_space<vmem>>, vector<1x1x128xf32>,
    return
  }
  func.func @transform_2(%arg0: i32, %arg1: memref<128xi32, #tpu.memory_space<smem>>, %arg2: memref<128xi32, #tpu.memory_space<smem>>) -> (i32, i32) {
    %c0_i32 = arith.constant 0 : i32
    %c0_i32_0 = arith.constant 0 : i32
    %c0_i32_1 = arith.constant 0 : i32
    return %c0_i32, %c0_i32_0 : i32, i32
  }
  func.func @transform_3(%arg0: i32, %arg1: memref<128xi32, #tpu.memory_space<smem>>, %arg2: memref<128xi32, #tpu.memory_space<smem>>) -> (i32, i32) {
    %c0_i32 = arith.constant 0 : i32
    %c0_i32_0 = arith.constant 0 : i32
    %c0_i32_1 = arith.constant 0 : i32
    return %c0_i32, %c0_i32_0 : i32, i32
  }
  func.func @transform_4(%arg0: i32, %arg1: memref<128xi32, #tpu.memory_space<smem>>, %arg2: memref<128xi32, #tpu.memory_space<smem>>) -> (i32, i32, i32) {
    %c0_i32 = arith.constant 0 : i32
    %c0_i32_0 = arith.constant 0 : i32
    %c0_i32_1 = arith.constant 0 : i32
    return %arg0, %c0_i32, %c0_i32_0 : i32, i32, i32
  }
}

</mosaic_0001>

<llo_original>
// kernel: tpu_custom_call.1
$region0: #{tpu_custom_call.1}
  #allocation0 [shape = 'u32[]', space=smem, size = 0x4, offset = 0x4, fixed_abs, tag = 'smem constant byte address 0x4 - core index']
  #allocation1 [shape = 'u32[144,128]{1,0:T(1,128)}', space=vmem, size = 0x12000, scoped, tag = 'internal scratch']
  #allocation2 [shape = 'f32[128,32]{1,0:T(8,128)}', space=vmem, size = 0x10000, scoped, tag = 'scratch operand']
  #allocation3 [shape = 'f32[128,32]{1,0:T(8,128)}', space=vmem, size = 0x10000, scoped, tag = 'scratch operand']
  #allocation4 [shape = 's32[2]{0}', space=sflag, size = 0x8, scoped, tag = 'scratch operand']
  #allocation5 [shape = 's32[1]{0}', space=sflag, size = 0x4, scoped, tag = 'scoped memory for tpu_custom_call.1']
  #allocation6 [shape = 'u8[512]{0}', space=smem, size = 0x200, scoped, tag = 'prefetched SMEM operand 0']
  #allocation7 [shape = 'u8[512]{0}', space=smem, size = 0x200, scoped, tag = 'prefetched SMEM operand 1']
  #allocation8 [shape = 'f32[1,1]{1,0:T(1,128)S(6)}', space=smem, size = 0x200, scoped, tag = 'scoped memory for tpu_custom_call.1']
  #allocation11 [shape = 's32[]', space=sflag, size = 0x4, offset = 0, fixed_abs, tag = 'sflag constant byte address 0x0 - dummy sync flag']
  #allocation12 [shape = 's32[]', space=sflag, size = 0x4, offset = 0, fixed_abs, tag = 'sflag constant byte address 0x0 - dummy sync flag']
  %s0 = inlined_call_operand.vmem [shape: s32[128], index: 0, kind: input, shape index: {}]
  %s1 = inlined_call_operand.vmem [shape: s32[128], index: 1, kind: input, shape index: {}]
  %s2 = inlined_call_operand.vmem [shape: f32[64,32], index: 2, kind: input, shape index: {}]
  %s3 = inlined_call_operand.vmem [shape: f32[128,32], index: 3, kind: input, shape index: {}]
  %s4 = inlined_call_operand.vmem [shape: f32[2,32], index: 4, kind: input, shape index: {}]
  %s5 = inlined_call_operand.<no memory space> [shape: f32[1,1], index: 5, kind: input, shape index: {}]
  %s6 = inlined_call_operand.hbm [shape: f32[1,1,128], index: 6, kind: output, shape index: {}]
  %s7 = sld [smem:[#allocation0]]
  $region92: #{tpu_custom_call.1} parent=0
    _
  %s9 = ssub.s32 1, %s7
  %s10 = scalar_select 0, %s9, %s7
  %s11 = sshll.u32 %s0, 4
  %s12 = int_to_ptr.vmem [resolvable:$true] %s11
  %14 = dma.vmem_to_smem %s12, 16, [#allocation6], [#allocation5]
  %s15 = sshll.u32 %s1, 4
  %s16 = int_to_ptr.vmem [resolvable:$true] %s15
  %18 = dma.vmem_to_smem %s16, 16, [#allocation7], [#allocation5]
  %19 = sst [smem:[#allocation8]] %s5
  %20 = dma.done [#allocation5], 32
  %21 = sfence
  $region1: #{tpu_custom_call.1} parent=0
    #allocation9 [shape = 'u8[512]{0}', space=vmem, size = 0x400, scoped, tag = 'output window, operand 0, single buffered']
    #allocation10 [shape = 's32[1]{0}', space=sflag, size = 0x4, scoped, tag = 'scoped memory for tpu_custom_call.1']
    %22 = vsyncpa [#allocation10], 0
    // Predicated region
    $region2: #{tpu_custom_call.1} parent=1 // pred_check
      _
    $region3: #{tpu_custom_call.1} parent=1 // pred_check_branch
      %24 = sbr.rel (0) target = $region5
    $region4: #{tpu_custom_call.1} parent=1 // pred_region
      _
    $region5: #{tpu_custom_call.1} parent=1 // pred_fallthru
      _
    // Predicated region
    $region6: #{tpu_custom_call.1} parent=1 // pred_check
      _
    $region7: #{tpu_custom_call.1} parent=1 // pred_check_branch
      %26 = sbr.rel (0) target = $region9
    $region8: #{tpu_custom_call.1} parent=1 // pred_region
      _
    $region9: #{tpu_custom_call.1} parent=1 // pred_fallthru
      _
    %s27 = smul.u32 0, 128
    %s28 = ssub.s32 8, %s27
    %p29 = scmp.lt.s32.totalorder %s28, 128
    %s30 = scalar_select %p29, %s28, 128
    // While loop
    $region10: #{tpu_custom_call.1} parent=1 // loop_pre_header
      _
    $region11: #{tpu_custom_call.1} parent=1 // loop_header
      %s32 = sphi 0, %s34
      %p33 = scmp.ge.s32.totalorder %s32, %s30
    $region12: #{tpu_custom_call.1} parent=1 // loop_header_branch
      %36 = sbr.rel (%p33) target = $region16
    $region13: #{tpu_custom_call.1} parent=1 // loop_body
      %s37 = sadd.s32 %s27, %s32
      %s38 = sld [smem:[#allocation6 + %s37]]
      %s39 = sld [smem:[#allocation7 + %s37]]
      %s40 = scalar_lea.vmem %s2, %s38
      %s41 = scalar_lea.vmem [#allocation2], %s32
      %p43 = scmp.lt.u32.totalorder 1, 8
      %p44 = pneg %p43
      // Predicated region
      $region17: #{tpu_custom_call.1} parent=13 // pred_check
        _
      $region18: #{tpu_custom_call.1} parent=13 // pred_check_branch
        %46 = sbr.rel (%p43) target = $region20
      $region19: #{tpu_custom_call.1} parent=13 // pred_region
        %s61 = sand.u32 1, 7
        %p62 = scmp.eq.s32.totalorder %s61, 0
        %p63 = pneg %p62
        // Predicated region
        $region32: #{tpu_custom_call.1} parent=19 // pred_check
          _
        $region33: #{tpu_custom_call.1} parent=19 // pred_check_branch
          %65 = sbr.rel (%p62) target = $region35
        $region34: #{tpu_custom_call.1} parent=19 // pred_region
          %s66 = sand.u32 1, 7
          %s67 = ssub.s32 1, %s66
          %s68 = scalar_lea.vmem %s40, %s67
          %s69 = ssub.s32 1, %s66
          %s70 = scalar_lea.vmem %s41, %s69 [#allocation2]
          %s71 = sshllo.u32 0, %s66
          loop: start=0, step=1, limit=1
          $region36: #{tpu_custom_call.1} parent=34 // loop_pre_header
            _
          $region37: #{tpu_custom_call.1} parent=34 // loop_header
            %s73 = sphi 0, %s77
            %p74 = scmp.ge.s32.totalorder %s73, 1
            %s78 = sphi %s68, %s68
            %s79 = sphi %s70, %s70
          $region38: #{tpu_custom_call.1} parent=34 // loop_header_branch
            %76 = sbr.rel (%p74) target = $region42
          $region39: #{tpu_custom_call.1} parent=34 // loop_body
            %v80 = vld [vmem:[%s78] sm:%s71]
            %81 = vst [vmem:[%s79] sm:%s71] %v80
          $region40: #{tpu_custom_call.1} parent=34 // loop_footer
            %s77 = sadd.s32 1, %s73
          $region41: #{tpu_custom_call.1} parent=34 // loop_footer_branch
            %72 = sbr.rel target = $region37
          $region42: #{tpu_custom_call.1} parent=34 // loop_exit
            _
        $region35: #{tpu_custom_call.1} parent=19 // pred_fallthru
          _
      $region20: #{tpu_custom_call.1} parent=13 // pred_fallthru
        _
      // Predicated region
      $region21: #{tpu_custom_call.1} parent=13 // pred_check
        %p47 = pneg %p43
      $region22: #{tpu_custom_call.1} parent=13 // pred_check_branch
        %49 = sbr.rel (%p47) target = $region24
      $region23: #{tpu_custom_call.1} parent=13 // pred_region
        %s50 = sshllo.u32 0, 1
        loop: start=0, step=1, limit=1
        $region25: #{tpu_custom_call.1} parent=23 // loop_pre_header
          _
        $region26: #{tpu_custom_call.1} parent=23 // loop_header
          %s52 = sphi 0, %s56
          %p53 = scmp.ge.s32.totalorder %s52, 1
          %s57 = sphi %s40, %s40
          %s58 = sphi %s41, %s41
        $region27: #{tpu_custom_call.1} parent=23 // loop_header_branch
          %55 = sbr.rel (%p53) target = $region31
        $region28: #{tpu_custom_call.1} parent=23 // loop_body
          %v59 = vld [vmem:[%s57] sm:%s50]
          %60 = vst [vmem:[%s58] sm:%s50] %v59
        $region29: #{tpu_custom_call.1} parent=23 // loop_footer
          %s56 = sadd.s32 1, %s52
        $region30: #{tpu_custom_call.1} parent=23 // loop_footer_branch
          %51 = sbr.rel target = $region26
        $region31: #{tpu_custom_call.1} parent=23 // loop_exit
          _
      $region24: #{tpu_custom_call.1} parent=13 // pred_fallthru
        _
      // Predicated region
      $region43: #{tpu_custom_call.1} parent=13 // pred_check
        _
      $region44: #{tpu_custom_call.1} parent=13 // pred_check_branch
        %84 = sbr.rel (0) target = $region46
      $region45: #{tpu_custom_call.1} parent=13 // pred_region
        %85 = vsyncadd [#allocation4], 16
      $region46: #{tpu_custom_call.1} parent=13 // pred_fallthru
        _
      %s86 = scalar_lea.vmem %s3, %s39
      %s87 = scalar_lea.vmem [#allocation3], %s32
      %s88 = scalar_lea.sflag [#allocation4], 1
      %p90 = scmp.lt.u32.totalorder 1, 8
      %p91 = pneg %p90
      // Predicated region
      $region47: #{tpu_custom_call.1} parent=13 // pred_check
        _
      $region48: #{tpu_custom_call.1} parent=13 // pred_check_branch
        %93 = sbr.rel (%p90) target = $region50
      $region49: #{tpu_custom_call.1} parent=13 // pred_region
        %s108 = sand.u32 1, 7
        %p109 = scmp.eq.s32.totalorder %s108, 0
        %p110 = pneg %p109
        // Predicated region
        $region62: #{tpu_custom_call.1} parent=49 // pred_check
          _
        $region63: #{tpu_custom_call.1} parent=49 // pred_check_branch
          %112 = sbr.rel (%p109) target = $region65
        $region64: #{tpu_custom_call.1} parent=49 // pred_region
          %s113 = sand.u32 1, 7
          %s114 = ssub.s32 1, %s113
          %s115 = scalar_lea.vmem %s86, %s114
          %s116 = ssub.s32 1, %s113
          %s117 = scalar_lea.vmem %s87, %s116 [#allocation3]
          %s118 = sshllo.u32 0, %s113
          loop: start=0, step=1, limit=1
          $region66: #{tpu_custom_call.1} parent=64 // loop_pre_header
            _
          $region67: #{tpu_custom_call.1} parent=64 // loop_header
            %s120 = sphi 0, %s124
            %p121 = scmp.ge.s32.totalorder %s120, 1
            %s125 = sphi %s115, %s115
            %s126 = sphi %s117, %s117
          $region68: #{tpu_custom_call.1} parent=64 // loop_header_branch
            %123 = sbr.rel (%p121) target = $region72
          $region69: #{tpu_custom_call.1} parent=64 // loop_body
            %v127 = vld [vmem:[%s125] sm:%s118]
            %128 = vst [vmem:[%s126] sm:%s118] %v127
          $region70: #{tpu_custom_call.1} parent=64 // loop_footer
            %s124 = sadd.s32 1, %s120
          $region71: #{tpu_custom_call.1} parent=64 // loop_footer_branch
            %119 = sbr.rel target = $region67
          $region72: #{tpu_custom_call.1} parent=64 // loop_exit
            _
        $region65: #{tpu_custom_call.1} parent=49 // pred_fallthru
          _
      $region50: #{tpu_custom_call.1} parent=13 // pred_fallthru
        _
      // Predicated region
      $region51: #{tpu_custom_call.1} parent=13 // pred_check
        %p94 = pneg %p90
      $region52: #{tpu_custom_call.1} parent=13 // pred_check_branch
        %96 = sbr.rel (%p94) target = $region54
      $region53: #{tpu_custom_call.1} parent=13 // pred_region
        %s97 = sshllo.u32 0, 1
        loop: start=0, step=1, limit=1
        $region55: #{tpu_custom_call.1} parent=53 // loop_pre_header
          _
        $region56: #{tpu_custom_call.1} parent=53 // loop_header
          %s99 = sphi 0, %s103
          %p100 = scmp.ge.s32.totalorder %s99, 1
          %s104 = sphi %s86, %s86
          %s105 = sphi %s87, %s87
        $region57: #{tpu_custom_call.1} parent=53 // loop_header_branch
          %102 = sbr.rel (%p100) target = $region61
        $region58: #{tpu_custom_call.1} parent=53 // loop_body
          %v106 = vld [vmem:[%s104] sm:%s97]
          %107 = vst [vmem:[%s105] sm:%s97] %v106
        $region59: #{tpu_custom_call.1} parent=53 // loop_footer
          %s103 = sadd.s32 1, %s99
        $region60: #{tpu_custom_call.1} parent=53 // loop_footer_branch
          %98 = sbr.rel target = $region56
        $region61: #{tpu_custom_call.1} parent=53 // loop_exit
          _
      $region54: #{tpu_custom_call.1} parent=13 // pred_fallthru
        _
      // Predicated region
      $region73: #{tpu_custom_call.1} parent=13 // pred_check
        _
      $region74: #{tpu_custom_call.1} parent=13 // pred_check_branch
        %131 = sbr.rel (0) target = $region76
      $region75: #{tpu_custom_call.1} parent=13 // pred_region
        %132 = vsyncadd %s88, 16
      $region76: #{tpu_custom_call.1} parent=13 // pred_fallthru
        _
    $region14: #{tpu_custom_call.1} parent=1 // loop_footer
      %s34 = sadd.s32 %s32, 1
    $region15: #{tpu_custom_call.1} parent=1 // loop_footer_branch
      %31 = sbr.rel target = $region11
    $region16: #{tpu_custom_call.1} parent=1 // loop_exit
      _
    // While loop
    $region77: #{tpu_custom_call.1} parent=1 // loop_pre_header
      _
    $region78: #{tpu_custom_call.1} parent=1 // loop_header
      %s134 = sphi 0, %s136
      %p135 = scmp.ge.s32.totalorder %s134, %s30
    $region79: #{tpu_custom_call.1} parent=1 // loop_header_branch
      %138 = sbr.rel (%p135) target = $region83
    $region80: #{tpu_custom_call.1} parent=1 // loop_body
      %140 = dma.done [#allocation4], 16
      %s141 = scalar_lea.sflag [#allocation4], 1
      %143 = dma.done %s141, 16
    $region81: #{tpu_custom_call.1} parent=1 // loop_footer
      %s136 = sadd.s32 %s134, 1
    $region82: #{tpu_custom_call.1} parent=1 // loop_footer_branch
      %133 = sbr.rel target = $region78
    $region83: #{tpu_custom_call.1} parent=1 // loop_exit
      _
    %v144 = vld [vmem:[%s4] sm:$0x3]
    %v145 = vld [vmem:[#allocation2] sm:$0xff]
    %v146 = vld [vmem:[#allocation2 + $0x8] sm:$0xff]
    %v147 = vld [vmem:[#allocation2 + $0x10] sm:$0xff]
    %v148 = vld [vmem:[#allocation2 + $0x18] sm:$0xff]
    %v149 = vld [vmem:[#allocation2 + $0x20] sm:$0xff]
    %v150 = vld [vmem:[#allocation2 + $0x28] sm:$0xff]
    %v151 = vld [vmem:[#allocation2 + $0x30] sm:$0xff]
    %v152 = vld [vmem:[#allocation2 + $0x38] sm:$0xff]
    %v153 = vld [vmem:[#allocation2 + $0x40] sm:$0xff]
    %v154 = vld [vmem:[#allocation2 + $0x48] sm:$0xff]
    %v155 = vld [vmem:[#allocation2 + $0x50] sm:$0xff]
    %v156 = vld [vmem:[#allocation2 + $0x58] sm:$0xff]
    %v157 = vld [vmem:[#allocation2 + $0x60] sm:$0xff]
    %v158 = vld [vmem:[#allocation2 + $0x68] sm:$0xff]
    %v159 = vld [vmem:[#allocation2 + $0x70] sm:$0xff]
    %v160 = vld [vmem:[#allocation2 + $0x78] sm:$0xff]
    %v161 = vlaneseq
    %v162 = vshrl.u32 %v161, 7
    %v163 = vsub.s32 0, %v162
    %v164 = vrot.slane %v144, %v163
    %v165 = vmul.f32 %v145, %v164
    %v166 = vmul.f32 %v146, %v164
    %v167 = vmul.f32 %v147, %v164
    %v168 = vmul.f32 %v148, %v164
    %v169 = vmul.f32 %v149, %v164
    %v170 = vmul.f32 %v150, %v164
    %v171 = vmul.f32 %v151, %v164
    %v172 = vmul.f32 %v152, %v164
    %v173 = vmul.f32 %v153, %v164
    %v174 = vmul.f32 %v154, %v164
    %v175 = vmul.f32 %v155, %v164
    %v176 = vmul.f32 %v156, %v164
    %v177 = vmul.f32 %v157, %v164
    %v178 = vmul.f32 %v158, %v164
    %v179 = vmul.f32 %v159, %v164
    %v180 = vmul.f32 %v160, %v164
    %v181 = vld [vmem:[#allocation3] sm:$0xff]
    %v182 = vld [vmem:[#allocation3 + $0x8] sm:$0xff]
    %v183 = vld [vmem:[#allocation3 + $0x10] sm:$0xff]
    %v184 = vld [vmem:[#allocation3 + $0x18] sm:$0xff]
    %v185 = vld [vmem:[#allocation3 + $0x20] sm:$0xff]
    %v186 = vld [vmem:[#allocation3 + $0x28] sm:$0xff]
    %v187 = vld [vmem:[#allocation3 + $0x30] sm:$0xff]
    %v188 = vld [vmem:[#allocation3 + $0x38] sm:$0xff]
    %v189 = vld [vmem:[#allocation3 + $0x40] sm:$0xff]
    %v190 = vld [vmem:[#allocation3 + $0x48] sm:$0xff]
    %v191 = vld [vmem:[#allocation3 + $0x50] sm:$0xff]
    %v192 = vld [vmem:[#allocation3 + $0x58] sm:$0xff]
    %v193 = vld [vmem:[#allocation3 + $0x60] sm:$0xff]
    %v194 = vld [vmem:[#allocation3 + $0x68] sm:$0xff]
    %v195 = vld [vmem:[#allocation3 + $0x70] sm:$0xff]
    %v196 = vld [vmem:[#allocation3 + $0x78] sm:$0xff]
    %v197 = vlaneseq
    %v198 = vshrl.u32 %v197, 7
    %v199 = vsub.s32 1, %v198
    %v200 = vrot.slane %v144, %v199
    %v201 = vmul.f32 %v181, %v200
    %v202 = vmul.f32 %v182, %v200
    %v203 = vmul.f32 %v183, %v200
    %v204 = vmul.f32 %v184, %v200
    %v205 = vmul.f32 %v185, %v200
    %v206 = vmul.f32 %v186, %v200
    %v207 = vmul.f32 %v187, %v200
    %v208 = vmul.f32 %v188, %v200
    %v209 = vmul.f32 %v189, %v200
    %v210 = vmul.f32 %v190, %v200
    %v211 = vmul.f32 %v191, %v200
    %v212 = vmul.f32 %v192, %v200
    %v213 = vmul.f32 %v193, %v200
    %v214 = vmul.f32 %v194, %v200
    %v215 = vmul.f32 %v195, %v200
    %v216 = vmul.f32 %v196, %v200
    %v217 = vadd.f32 %v165, %v201
    %v218 = vadd.f32 %v166, %v202
    %v219 = vadd.f32 %v167, %v203
    %v220 = vadd.f32 %v168, %v204
    %v221 = vadd.f32 %v169, %v205
    %v222 = vadd.f32 %v170, %v206
    %v223 = vadd.f32 %v171, %v207
    %v224 = vadd.f32 %v172, %v208
    %v225 = vadd.f32 %v173, %v209
    %v226 = vadd.f32 %v174, %v210
    %v227 = vadd.f32 %v175, %v211
    %v228 = vadd.f32 %v176, %v212
    %v229 = vadd.f32 %v177, %v213
    %v230 = vadd.f32 %v178, %v214
    %v231 = vadd.f32 %v179, %v215
    %v232 = vadd.f32 %v180, %v216
    %vm233 = vcmask 261120
    %v234 = vsel %vm233, %v217, 0.0
    %235 = vadd.xlane.f32.xlu0 %v234
    %v236 = vpop.xlane.xlu0 %235
    %v237 = vsel %vm233, %v218, 0.0
    %238 = vadd.xlane.f32.xlu0 %v237
    %v239 = vpop.xlane.xlu0 %238
    %v240 = vsel %vm233, %v219, 0.0
    %241 = vadd.xlane.f32.xlu0 %v240
    %v242 = vpop.xlane.xlu0 %241
    %v243 = vsel %vm233, %v220, 0.0
    %244 = vadd.xlane.f32.xlu0 %v243
    %v245 = vpop.xlane.xlu0 %244
    %v246 = vsel %vm233, %v221, 0.0
    %247 = vadd.xlane.f32.xlu0 %v246
    %v248 = vpop.xlane.xlu0 %247
    %v249 = vsel %vm233, %v222, 0.0
    %250 = vadd.xlane.f32.xlu0 %v249
    %v251 = vpop.xlane.xlu0 %250
    %v252 = vsel %vm233, %v223, 0.0
    %253 = vadd.xlane.f32.xlu0 %v252
    %v254 = vpop.xlane.xlu0 %253
    %v255 = vsel %vm233, %v224, 0.0
    %256 = vadd.xlane.f32.xlu0 %v255
    %v257 = vpop.xlane.xlu0 %256
    %v258 = vsel %vm233, %v225, 0.0
    %259 = vadd.xlane.f32.xlu0 %v258
    %v260 = vpop.xlane.xlu0 %259
    %v261 = vsel %vm233, %v226, 0.0
    %262 = vadd.xlane.f32.xlu0 %v261
    %v263 = vpop.xlane.xlu0 %262
    %v264 = vsel %vm233, %v227, 0.0
    %265 = vadd.xlane.f32.xlu0 %v264
    %v266 = vpop.xlane.xlu0 %265
    %v267 = vsel %vm233, %v228, 0.0
    %268 = vadd.xlane.f32.xlu0 %v267
    %v269 = vpop.xlane.xlu0 %268
    %v270 = vsel %vm233, %v229, 0.0
    %271 = vadd.xlane.f32.xlu0 %v270
    %v272 = vpop.xlane.xlu0 %271
    %v273 = vsel %vm233, %v230, 0.0
    %274 = vadd.xlane.f32.xlu0 %v273
    %v275 = vpop.xlane.xlu0 %274
    %v276 = vsel %vm233, %v231, 0.0
    %277 = vadd.xlane.f32.xlu0 %v276
    %v278 = vpop.xlane.xlu0 %277
    %v279 = vsel %vm233, %v232, 0.0
    %280 = vadd.xlane.f32.xlu0 %v279
    %v281 = vpop.xlane.xlu0 %280
    %s282 = sld [smem:[#allocation8]]
    %v283 = vstv %s282
    %v284 = vadd.f32 %v236, %v283
    %v285 = vadd.f32 %v239, %v283
    %v286 = vadd.f32 %v242, %v283
    %v287 = vadd.f32 %v245, %v283
    %v288 = vadd.f32 %v248, %v283
    %v289 = vadd.f32 %v251, %v283
    %v290 = vadd.f32 %v254, %v283
    %v291 = vadd.f32 %v257, %v283
    %v292 = vadd.f32 %v260, %v283
    %v293 = vadd.f32 %v263, %v283
    %v294 = vadd.f32 %v266, %v283
    %v295 = vadd.f32 %v269, %v283
    %v296 = vadd.f32 %v272, %v283
    %v297 = vadd.f32 %v275, %v283
    %v298 = vadd.f32 %v278, %v283
    %v299 = vadd.f32 %v281, %v283
    %v316 = vlaneseq
    %v317 = vand.u32 %v316, 127
    %v318 = vlaneseq
    %v319 = vshrl.u32 %v318, 7
    %v320 = vsub.s32 %v317, %v319
    %v321 = vrot.slane %v284, %v320
    %v322 = vadd.s32 %v317, 4294967288
    %v323 = vlaneseq
    %v324 = vshrl.u32 %v323, 7
    %v325 = vsub.s32 %v322, %v324
    %v326 = vrot.slane %v285, %v325
    %vm327 = vcmask 130112
    %v328 = vsel %vm327, %v326, %v321
    %v329 = vadd.s32 %v317, 4294967280
    %v330 = vlaneseq
    %v331 = vshrl.u32 %v330, 7
    %v332 = vsub.s32 %v329, %v331
    %v333 = vrot.slane %v286, %v332
    %vm334 = vcmask 195712
    %v335 = vsel %vm334, %v333, %v328
    %v336 = vadd.s32 %v317, 4294967272
    %v337 = vlaneseq
    %v338 = vshrl.u32 %v337, 7
    %v339 = vsub.s32 %v336, %v338
    %v340 = vrot.slane %v287, %v339
    %vm341 = vcmask 261312
    %v342 = vsel %vm341, %v340, %v335
    %v343 = vadd.s32 %v317, 4294967264
    %v344 = vlaneseq
    %v345 = vshrl.u32 %v344, 7
    %v346 = vsub.s32 %v343, %v345
    %v347 = vrot.slane %v288, %v346
    %vm348 = vcmask 326912
    %v349 = vsel %vm348, %v347, %v342
    %v350 = vadd.s32 %v317, 4294967256
    %v351 = vlaneseq
    %v352 = vshrl.u32 %v351, 7
    %v353 = vsub.s32 %v350, %v352
    %v354 = vrot.slane %v289, %v353
    %vm355 = vcmask 392512
    %v356 = vsel %vm355, %v354, %v349
    %v357 = vadd.s32 %v317, 4294967248
    %v358 = vlaneseq
    %v359 = vshrl.u32 %v358, 7
    %v360 = vsub.s32 %v357, %v359
    %v361 = vrot.slane %v290, %v360
    %vm362 = vcmask 458112
    %v363 = vsel %vm362, %v361, %v356
    %v364 = vadd.s32 %v317, 4294967240
    %v365 = vlaneseq
    %v366 = vshrl.u32 %v365, 7
    %v367 = vsub.s32 %v364, %v366
    %v368 = vrot.slane %v291, %v367
    %vm369 = vcmask 523712
    %v370 = vsel %vm369, %v368, %v363
    %v371 = vadd.s32 %v317, 4294967232
    %v372 = vlaneseq
    %v373 = vshrl.u32 %v372, 7
    %v374 = vsub.s32 %v371, %v373
    %v375 = vrot.slane %v292, %v374
    %vm376 = vcmask 589312
    %v377 = vsel %vm376, %v375, %v370
    %v378 = vadd.s32 %v317, 4294967224
    %v379 = vlaneseq
    %v380 = vshrl.u32 %v379, 7
    %v381 = vsub.s32 %v378, %v380
    %v382 = vrot.slane %v293, %v381
    %vm383 = vcmask 654912
    %v384 = vsel %vm383, %v382, %v377
    %v385 = vadd.s32 %v317, 4294967216
    %v386 = vlaneseq
    %v387 = vshrl.u32 %v386, 7
    %v388 = vsub.s32 %v385, %v387
    %v389 = vrot.slane %v294, %v388
    %vm390 = vcmask 720512
    %v391 = vsel %vm390, %v389, %v384
    %v392 = vadd.s32 %v317, 4294967208
    %v393 = vlaneseq
    %v394 = vshrl.u32 %v393, 7
    %v395 = vsub.s32 %v392, %v394
    %v396 = vrot.slane %v295, %v395
    %vm397 = vcmask 786112
    %v398 = vsel %vm397, %v396, %v391
    %v399 = vadd.s32 %v317, 4294967200
    %v400 = vlaneseq
    %v401 = vshrl.u32 %v400, 7
    %v402 = vsub.s32 %v399, %v401
    %v403 = vrot.slane %v296, %v402
    %vm404 = vcmask 851712
    %v405 = vsel %vm404, %v403, %v398
    %v406 = vadd.s32 %v317, 4294967192
    %v407 = vlaneseq
    %v408 = vshrl.u32 %v407, 7
    %v409 = vsub.s32 %v406, %v408
    %v410 = vrot.slane %v297, %v409
    %vm411 = vcmask 917312
    %v412 = vsel %vm411, %v410, %v405
    %v413 = vadd.s32 %v317, 4294967184
    %v414 = vlaneseq
    %v415 = vshrl.u32 %v414, 7
    %v416 = vsub.s32 %v413, %v415
    %v417 = vrot.slane %v298, %v416
    %vm418 = vcmask 982912
    %v419 = vsel %vm418, %v417, %v412
    %v420 = vadd.s32 %v317, 4294967176
    %v421 = vlaneseq
    %v422 = vshrl.u32 %v421, 7
    %v423 = vsub.s32 %v420, %v422
    %v424 = vrot.slane %v299, %v423
    %vm425 = vcmask 1048512
    %v426 = vsel %vm425, %v424, %v419
    %428 = vst [vmem:[#allocation9] sm:$0x1] %v426
    // Predicated region
    $region84: #{tpu_custom_call.1} parent=1 // pred_check
      _
    $region85: #{tpu_custom_call.1} parent=1 // pred_check_branch
      %430 = sbr.rel (0) target = $region87
    $region86: #{tpu_custom_call.1} parent=1 // pred_region
      %s432 = ssub.s32 16, 16
      %433 = vsyncadd [#allocation10], %s432
      %s435 = sshll.u32 [#allocation9], 4
      %s436 = int_to_ptr.vmem [resolvable:$true] %s435
      %438 = dma.vmem_to_hbm [thread:$0]  %s436, 16, %s6, [#allocation10]
    $region87: #{tpu_custom_call.1} parent=1 // pred_fallthru
      _
    // Predicated region
    $region88: #{tpu_custom_call.1} parent=1 // pred_check
      _
    $region89: #{tpu_custom_call.1} parent=1 // pred_check_branch
      %440 = sbr.rel (0) target = $region91
    $region90: #{tpu_custom_call.1} parent=1 // pred_region
      %441 = dma.done [#allocation10], 16
    $region91: #{tpu_custom_call.1} parent=1 // pred_fallthru
      _
    %442 = vsyncpa [#allocation10], 1
  %443 = vsyncmov [#allocation4]
  %s444 = vpop.sfrf %443
  %p445 = scmp.eq.s32.totalorder %s444, 0
  %p446 = pneg %p445
  %448 = shalt.err (%p446)
  %s449 = scalar_lea.sflag [#allocation4], 1
  %450 = vsyncmov %s449
  %s451 = vpop.sfrf %450
  %p452 = scmp.eq.s32.totalorder %s451, 0
  %p453 = pneg %p452
  %455 = shalt.err (%p453)

</llo_original>
